<compile_context>
chip_gen: v6e
topology: v6e:2x2x1
jax: 0.10.0
libtpu: 0.0.40
codegen_flags: <defaults>
</compile_context>

<pallas_src>
import functools
import numpy as np

import jax
import jax.numpy as jnp
from jax import lax
from jax.experimental import pallas as pl
from jax.experimental.pallas import tpu as pltpu


def _degree_expand_index(lmax):
    """m-index -> degree l, same as get_l_to_all_m_expand_index."""
    idx = np.zeros((lmax + 1) ** 2, dtype=np.int32)
    for l in range(lmax + 1):
        idx[l * l: l * l + 2 * l + 1] = l
    return idx


def _norm_weights(lmax, normalization, std_balance_degrees):
    """Per-m weight so feature_norm = sum_s w[s] * x[:, s, :]^2 reproduces all
    three normalization modes of the PyTorch module (channel mean NOT folded)."""
    s_total = (lmax + 1) ** 2
    w = np.zeros((s_total,), dtype=np.float32)
    if normalization == "norm":
        w[:] = 1.0
    elif std_balance_degrees:
        for l in range(lmax + 1):
            w[l * l: l * l + 2 * l + 1] = 1.0 / (2 * l + 1)
        w /= (lmax + 1)
    else:  # 'component' without balancing -> plain mean over sphere basis
        w[:] = 1.0 / s_total
    return w


def _eqv_rmsnorm_kernel(x_ref, bal_ref, w_ref, b_ref, out_ref, *,
                        eps, centering, affine, c_dim, bal0):
    # x block: (TN, S*C), channels fastest within each degree slot.
    x = x_ref[...].astype(jnp.float32)
    bal = bal_ref[...]                                       # (1, S*C), 1/C folded,
                                                             # l=0 lanes zeroed if centering
    fn = jnp.sum(x * x * bal, axis=-1, keepdims=True)        # (TN, 1)

    if centering:
        x0 = x[:, 0:c_dim]                                   # (TN, C)  l=0 lanes
        m = jnp.mean(x0, axis=-1, keepdims=True)             # (TN, 1)
        x0c = x0 - m
        # exact centered l=0 contribution to the norm (bal0 = w_norm[0]/C)
        fn = fn + bal0 * jnp.sum(x0c * x0c, axis=-1, keepdims=True)

    inv = lax.rsqrt(fn + eps)                                # (TN, 1) -> EUP

    out = x * inv                                            # no materialized inv*w scale
    if affine:
        w = w_ref[...]                                       # resident (1, S*C)
        out = out * w
    out_ref[...] = out.astype(out_ref.dtype)

    if centering:
        # fix up only the l=0 lanes with the centered (and biased) values
        out0 = x0c * inv                                     # (TN, C)
        if affine:
            out0 = out0 * w[:, 0:c_dim] + b_ref[...]         # bias only when affine&centering
        out_ref[:, 0:c_dim] = out0.astype(out_ref.dtype)


def equivariant_rms_norm_sh(x, affine_weight=None, affine_bias=None, *,
                            lmax, eps=1e-5, affine=True, centering=True,
                            std_balance_degrees=True, normalization="component",
                            tile_n=None):
    """x: [N, (lmax+1)^2, C].  Returns array of same shape/dtype."""
    assert normalization in ("norm", "component")
    if normalization == "norm":
        assert not std_balance_degrees
    n, s, c = x.shape
    assert s == (lmax + 1) ** 2, (s, lmax)
    sc = s * c

    # --- resident per-lane operands (built once on host / as tiny jnp arrays) ---
    w_norm = _norm_weights(lmax, normalization, std_balance_degrees)      # (S,)
    bal_np = (np.repeat(w_norm, c) / c).astype(np.float32)                # 1/C folded
    bal0 = float(w_norm[0] / c)
    if centering:
        bal_np = bal_np.copy()
        bal_np[:c] = 0.0          # l=0 handled exactly via the centered narrow path
    bal_flat = jnp.asarray(bal_np).reshape(1, sc)

    if affine:
        assert affine_weight is not None
        w_exp = jnp.asarray(affine_weight, jnp.float32)[
            jnp.asarray(_degree_expand_index(lmax))]                      # (S, C)
        w_flat = w_exp.reshape(1, sc)
    else:
        w_flat = jnp.ones((1, sc), jnp.float32)
    if affine and centering:
        assert affine_bias is not None
        b_row = jnp.asarray(affine_bias, jnp.float32).reshape(1, c)
    else:
        b_row = jnp.zeros((1, c), jnp.float32)

    # --- tile sizing: big streaming blocks, >=2 grid blocks for v7x megacore ---
    itemsize = jnp.dtype(x.dtype).itemsize
    if tile_n is None:
        # double-buffered in+out blocks (4*itemsize) + ~3 live f32 temporaries (12B)
        per_elem = 4 * itemsize + 12
        budget = 32 << 20                       # of the 48 MiB vmem limit below
        tile_n = max(8, budget // (sc * per_elem))
    tile_n = int(min(tile_n, 1024))
    if tile_n >= n and n > 1:
        tile_n = -(-n // 2)                     # >= 2 blocks so both v7x TCs get work
    tile_n = -(-tile_n // 8) * 8                # sublane-aligned block rows
    if tile_n > n:
        tile_n = n                              # block dim == full array dim is legal
    grid = (pl.cdiv(n, tile_n),)                # ragged last tile handled by Pallas

    kernel = functools.partial(_eqv_rmsnorm_kernel, eps=float(eps),
                               centering=bool(centering), affine=bool(affine),
                               c_dim=int(c), bal0=bal0)

    cost = pl.CostEstimate(
        flops=6 * n * s * c,
        transcendentals=n,
        bytes_accessed=2 * n * s * c * itemsize + 4 * (2 * sc + c),
    )

    x2 = x.reshape(n, sc)                       # free for contiguous row-major buffer
    out2 = pl.pallas_call(
        kernel,
        out_shape=jax.ShapeDtypeStruct((n, sc), x.dtype),
        grid_spec=pltpu.PrefetchScalarGridSpec(
            num_scalar_prefetch=0,
            grid=grid,
            in_specs=[
                pl.BlockSpec((tile_n, sc), lambda i: (i, 0)),  # x slab
                pl.BlockSpec((1, sc), lambda i: (0, 0)),       # balance/norm weights (resident)
                pl.BlockSpec((1, sc), lambda i: (0, 0)),       # degree-expanded affine weight
                pl.BlockSpec((1, c), lambda i: (0, 0)),        # affine bias row
            ],
            out_specs=pl.BlockSpec((tile_n, sc), lambda i: (i, 0)),
        ),
        compiler_params=pltpu.CompilerParams(
            dimension_semantics=("parallel",),          # node tiles shard across TCs (v7x)
            vmem_limit_bytes=48 * 1024 * 1024,          # > v5e/v6e defaults, < v7x physical
        ),
        cost_estimate=cost,
    )(x2, bal_flat, w_flat, b_row)
    return out2.reshape(n, s, c)


def _reference(x, affine_weight, affine_bias, *, lmax, eps, affine, centering,
               std_balance_degrees, normalization):
    """Pure-JAX mirror of the PyTorch forward."""
    x = x.astype(jnp.float32)
    if centering:
        x0 = x[:, 0:1, :]
        x0 = x0 - jnp.mean(x0, axis=2, keepdims=True)
        x = jnp.concatenate([x0, x[:, 1:, :]], axis=1)
    bal = jnp.asarray(_norm_weights(lmax, normalization, std_balance_degrees)).reshape(-1, 1)
    fn = jnp.sum(x * x * bal[None, :, :], axis=1, keepdims=True)
    fn = jnp.mean(fn, axis=2, keepdims=True)
    inv = lax.rsqrt(fn + eps)
    if affine:
        w = jnp.asarray(affine_weight, jnp.float32)[_degree_expand_index(lmax)]
        inv = inv * w[None]
    out = x * inv
    if affine and centering:
        out = out.at[:, 0:1, :].add(
            jnp.asarray(affine_bias, jnp.float32)[None, None, :])
    return out


if __name__ == "__main__":
    key = jax.random.PRNGKey(0)
    lmax = 3
    S = (lmax + 1) ** 2       # 16 spherical-harmonic components
    C = 128                   # channels (lane-dense)
    N = 64                    # nodes -> grid of 2 blocks (both v7x TCs busy)

    k1, k2, k3 = jax.random.split(key, 3)
    x = jax.random.normal(k1, (N, S, C), dtype=jnp.float32)
    affine_weight = 1.0 + 0.1 * jax.random.normal(k2, (lmax + 1, C), dtype=jnp.float32)
    affine_bias = 0.1 * jax.random.normal(k3, (C,), dtype=jnp.float32)

    out = equivariant_rms_norm_sh(x, affine_weight, affine_bias, lmax=lmax, eps=1e-5)
    out = jax.block_until_ready(out)

    ref = _reference(x, affine_weight, affine_bias, lmax=lmax, eps=1e-5,
                     affine=True, centering=True,
                     std_balance_degrees=True, normalization="component")

    assert out.shape == (N, S, C), out.shape
    max_err = float(jnp.max(jnp.abs(out - ref)))
    assert jnp.allclose(out, ref, atol=1e-5, rtol=1e-5), max_err

    print("KERNEL_OK")
</pallas_src>

<mosaic_0001>
module attributes {stable_mosaic.version = 11 : i64} {
  func.func @_eqv_rmsnorm_kernel(%arg0: i32, %arg1: memref<32x2048xf32, #tpu.memory_space<vmem>>, %arg2: memref<1x2048xf32, #tpu.memory_space<vmem>>, %arg3: memref<1x2048xf32, #tpu.memory_space<vmem>>, %arg4: memref<1x128xf32, #tpu.memory_space<vmem>>, %arg5: memref<32x2048xf32, #tpu.memory_space<vmem>>) attributes {dimension_semantics = [#tpu.dimension_semantics<parallel>], iteration_bounds = array<i64: 2>, scalar_prefetch = 0 : i64, scratch_operands = 0 : i64, tpu.core_type = #tpu.core_type<tc>, window_params = [{transform_indices = @transform_0, window_bounds = array<i64: 32, 2048>}, {pipeline_mode = #tpu.pipeline_mode<synchronous>, transform_indices = @transform_1, window_bounds = array<i64: 1, 2048>}, {pipeline_mode = #tpu.pipeline_mode<synchronous>, transform_indices = @transform_2, window_bounds = array<i64: 1, 2048>}, {pipeline_mode = #tpu.pipeline_mode<synchronous>, transform_indices = @transform_3, window_bounds = array<i64: 1, 128>}, {transform_indices = @transform_4, window_bounds = array<i64: 32, 2048>}]} {
    %c0 = arith.constant 0 : index
    %c0_0 = arith.constant 0 : index
    %0 = vector.load %arg1[%c0, %c0_0] : memref<32x2048xf32, #tpu.memory_space<vmem>>, vector<32x2048xf32>
    %c0_1 = arith.constant 0 : index
    %c0_2 = arith.constant 0 : index
    %1 = vector.load %arg2[%c0_1, %c0_2] : memref<1x2048xf32, #tpu.memory_space<vmem>>, vector<1x2048xf32>
    %2 = arith.mulf %0, %0 : vector<32x2048xf32>
    %3 = vector.broadcast %1 : vector<1x2048xf32> to vector<32x2048xf32>
    %4 = arith.mulf %2, %3 : vector<32x2048xf32>
    %cst = arith.constant dense<0.000000e+00> : vector<32xf32>
    %5 = vector.multi_reduction <add>, %4, %cst [1] : vector<32x2048xf32> to vector<32xf32>
    %6 = vector.shape_cast %5 : vector<32xf32> to vector<32x1xf32>
    %7 = vector.extract_strided_slice %0 {offsets = [0, 0], sizes = [32, 128], strides = [1, 1]} : vector<32x2048xf32> to vector<32x128xf32>
    %cst_3 = arith.constant dense<0.000000e+00> : vector<32xf32>
    %8 = vector.multi_reduction <add>, %7, %cst_3 [1] : vector<32x128xf32> to vector<32xf32>
    %9 = vector.shape_cast %8 : vector<32xf32> to vector<32x1xf32>
    %cst_4 = arith.constant 1.280000e+02 : f32
    %10 = vector.broadcast %cst_4 : f32 to vector<32x1xf32>
    %11 = arith.divf %9, %10 : vector<32x1xf32>
    %12 = vector.broadcast %11 : vector<32x1xf32> to vector<32x128xf32>
    %13 = arith.subf %7, %12 : vector<32x128xf32>
    %14 = arith.mulf %13, %13 : vector<32x128xf32>
    %cst_5 = arith.constant dense<0.000000e+00> : vector<32xf32>
    %15 = vector.multi_reduction <add>, %14, %cst_5 [1] : vector<32x128xf32> to vector<32xf32>
    %16 = vector.shape_cast %15 : vector<32xf32> to vector<32x1xf32>
    %cst_6 = arith.constant 0.001953125 : f32
    %17 = vector.broadcast %cst_6 : f32 to vector<32x1xf32>
    %18 = arith.mulf %17, %16 : vector<32x1xf32>
    %19 = arith.addf %6, %18 : vector<32x1xf32>
    %cst_7 = arith.constant 9.99999974E-6 : f32
    %20 = vector.broadcast %cst_7 : f32 to vector<32x1xf32>
    %21 = arith.addf %19, %20 : vector<32x1xf32>
    %22 = math.rsqrt %21 : vector<32x1xf32>
    %23 = vector.broadcast %22 : vector<32x1xf32> to vector<32x2048xf32>
    %24 = arith.mulf %0, %23 : vector<32x2048xf32>
    %c0_8 = arith.constant 0 : index
    %c0_9 = arith.constant 0 : index
    %25 = vector.load %arg3[%c0_8, %c0_9] : memref<1x2048xf32, #tpu.memory_space<vmem>>, vector<1x2048xf32>
    %26 = vector.broadcast %25 : vector<1x2048xf32> to vector<32x2048xf32>
    %27 = arith.mulf %24, %26 : vector<32x2048xf32>
    %c0_10 = arith.constant 0 : index
    %c0_11 = arith.constant 0 : index
    %28 = vector.load %arg5[%c0_10, %c0_11] : memref<32x2048xf32, #tpu.memory_space<vmem>>, vector<32x2048xf32>
    tpu.vector_store %arg5[%c0_10, %c0_11], %27 {strides = array<i32>} : memref<32x2048xf32, #tpu.memory_space<vmem>>, vector<32x2048xf32>,
    %29 = vector.broadcast %22 : vector<32x1xf32> to vector<32x128xf32>
    %30 = arith.mulf %13, %29 : vector<32x128xf32>
    %31 = vector.extract_strided_slice %25 {offsets = [0, 0], sizes = [1, 128], strides = [1, 1]} : vector<1x2048xf32> to vector<1x128xf32>
    %32 = vector.broadcast %31 : vector<1x128xf32> to vector<32x128xf32>
    %33 = arith.mulf %30, %32 : vector<32x128xf32>
    %c0_12 = arith.constant 0 : index
    %c0_13 = arith.constant 0 : index
    %34 = vector.load %arg4[%c0_12, %c0_13] : memref<1x128xf32, #tpu.memory_space<vmem>>, vector<1x128xf32>
    %35 = vector.broadcast %34 : vector<1x128xf32> to vector<32x128xf32>
    %36 = arith.addf %33, %35 : vector<32x128xf32>
    %c0_14 = arith.constant 0 : index
    %c0_15 = arith.constant 0 : index
    %37 = vector.load %arg5[%c0_14, %c0_15] : memref<32x2048xf32, #tpu.memory_space<vmem>>, vector<32x128xf32>
    tpu.vector_store %arg5[%c0_14, %c0_15], %36 {strides = array<i32>} : memref<32x2048xf32, #tpu.memory_space<vmem>>, vector<32x128xf32>,
    return
  }
  func.func @transform_0(%arg0: i32) -> (i32, i32) {
    %c0_i32 = arith.constant 0 : i32
    %c0_i32_0 = arith.constant 0 : i32
    return %arg0, %c0_i32 : i32, i32
  }
  func.func @transform_1(%arg0: i32) -> (i32, i32) {
    %c0_i32 = arith.constant 0 : i32
    %c0_i32_0 = arith.constant 0 : i32
    %c0_i32_1 = arith.constant 0 : i32
    return %c0_i32, %c0_i32_0 : i32, i32
  }
  func.func @transform_2(%arg0: i32) -> (i32, i32) {
    %c0_i32 = arith.constant 0 : i32
    %c0_i32_0 = arith.constant 0 : i32
    %c0_i32_1 = arith.constant 0 : i32
    return %c0_i32, %c0_i32_0 : i32, i32
  }
  func.func @transform_3(%arg0: i32) -> (i32, i32) {
    %c0_i32 = arith.constant 0 : i32
    %c0_i32_0 = arith.constant 0 : i32
    %c0_i32_1 = arith.constant 0 : i32
    return %c0_i32, %c0_i32_0 : i32, i32
  }
  func.func @transform_4(%arg0: i32) -> (i32, i32) {
    %c0_i32 = arith.constant 0 : i32
    %c0_i32_0 = arith.constant 0 : i32
    return %arg0, %c0_i32 : i32, i32
  }
}

</mosaic_0001>

<llo_original>
// kernel: tpu_custom_call.1
$region0: #{tpu_custom_call.1}
  #allocation0 [shape = 'u32[]', space=smem, size = 0x4, offset = 0x4, fixed_abs, tag = 'smem constant byte address 0x4 - core index']
  #allocation1 [shape = 'u32[144,128]{1,0:T(1,128)}', space=vmem, size = 0x12000, scoped, tag = 'internal scratch']
  %s0 = inlined_call_operand.hbm [shape: f32[64,2048], index: 0, kind: input, shape index: {}]
  %s1 = inlined_call_operand.hbm [shape: f32[1,2048], index: 1, kind: input, shape index: {}]
  %s2 = inlined_call_operand.hbm [shape: f32[1,2048], index: 2, kind: input, shape index: {}]
  %s3 = inlined_call_operand.vmem [shape: f32[1,128], index: 3, kind: input, shape index: {}]
  %s4 = inlined_call_operand.hbm [shape: f32[64,2048], index: 4, kind: output, shape index: {}]
  %s5 = sld [smem:[#allocation0]]
  $region61: #{tpu_custom_call.1} parent=0
    _
  %s7 = ssub.s32 1, %s5
  %s8 = scalar_select 0, %s7, %s5
  $region1: #{tpu_custom_call.1} parent=0
    #allocation2 [shape = 'u8[524288]{0}', space=vmem, size = 0x80000, scoped, tag = 'input window, operand 0']
    #allocation3 [shape = 's32[2]{0}', space=sflag, size = 0x8, scoped, tag = 'scoped memory for tpu_custom_call.1']
    #allocation4 [shape = 's32[2]{0}', space=sflag, size = 0x8, scoped, tag = 'scoped memory for tpu_custom_call.1']
    #allocation5 [shape = 'u8[8192]{0}', space=vmem, size = 0x2000, scoped, tag = 'input window, operand 1, single buffered']
    #allocation6 [shape = 's32[1]{0}', space=sflag, size = 0x4, scoped, tag = 'scoped memory for tpu_custom_call.1']
    #allocation7 [shape = 'u8[8192]{0}', space=vmem, size = 0x2000, scoped, tag = 'input window, operand 2, single buffered']
    #allocation8 [shape = 'u8[524288]{0}', space=vmem, size = 0x80000, scoped, tag = 'output window, operand 0']
    %9 = vsyncpa [#allocation3], 0
    %s10 = scalar_lea.sflag [#allocation3], 1
    %11 = vsyncpa %s10, 0
    %12 = vsyncpa [#allocation6], 0
    %13 = vsyncpa [#allocation4], 0
    %s14 = scalar_lea.sflag [#allocation4], 1
    %15 = vsyncpa %s14, 0
    loop: start=0, step=1, limit=4
    $region2: #{tpu_custom_call.1} parent=1 // loop_pre_header
      _
    $region3: #{tpu_custom_call.1} parent=1 // loop_header
      %s17 = sphi 0, %s21
      %p18 = scmp.ge.s32.totalorder %s17, 4
      %s27 = sphi 0, %s29
      %s30 = sphi 0, %s27
      %s31 = sphi 0, %s30
      %s47 = sphi 0, %s31
      %s51 = sphi 0, %s51
      %s53 = sphi 0, %s51
      %s54 = sphi 0, %s53
      %s68 = sphi 0, %s54
      %s72 = sphi 0, %s72
      %s74 = sphi 0, %s72
      %s75 = sphi 0, %s74
      %s89 = sphi 0, %s75
      %s93 = sphi 0, %s93
      %s95 = sphi 0, %s93
      %s96 = sphi 0, %s95
      %s110 = sphi 0, %s96
      %s116 = sphi 0, %s118
      %s119 = sphi 0, %s116
      %s120 = sphi 0, %s119
      %s136 = sphi 0, %s120
    $region4: #{tpu_custom_call.1} parent=1 // loop_header_branch
      %20 = sbr.rel (%p18) target = $region8
    $region5: #{tpu_custom_call.1} parent=1 // loop_body
      %s22 = ssub.s32 %s17, 1
      %s23 = ssub.s32 %s17, 2
      %s24 = sadd.s32 %s17, 1
      %s25 = ssub.s32 %s17, %s24
      %p26 = scmp.eq.s32.totalorder %s25, 0
      %s28 = sadd.s32 %s27, 1
      %s29 = scalar_select %p26, %s27, %s28
      %p32 = pneg %p26
      %p33 = scmp.eq.s32.totalorder %s17, 1
      %p34 = por %p32, %p33
      %p35 = scmp.ne.s32.totalorder %s27, %s30
      %p36 = scmp.eq.s32.totalorder %s17, 0
      %p37 = por %p35, %p36
      %p38 = scmp.ne.s32.totalorder %s27, %s30
      %p39 = scmp.eq.s32.totalorder %s22, 1
      %p40 = por %p38, %p39
      %p41 = scmp.ne.s32.totalorder %s30, %s31
      %p42 = scmp.eq.s32.totalorder %s22, 0
      %p43 = por %p41, %p42
      %p44 = scmp.ne.s32.totalorder %s30, %s31
      %p45 = scmp.eq.s32.totalorder %s23, 1
      %p46 = por %p44, %p45
      %p48 = scmp.ne.s32.totalorder %s31, %s47
      %p49 = scmp.eq.s32.totalorder %s23, 0
      %p50 = por %p48, %p49
      %s52 = sadd.s32 %s51, 1
      %p55 = scmp.eq.s32.totalorder %s17, 1
      %p56 = scmp.ne.s32.totalorder %s51, %s53
      %p57 = scmp.eq.s32.totalorder %s17, 0
      %p58 = por %p56, %p57
      %p59 = scmp.ne.s32.totalorder %s51, %s53
      %p60 = scmp.eq.s32.totalorder %s22, 1
      %p61 = por %p59, %p60
      %p62 = scmp.ne.s32.totalorder %s53, %s54
      %p63 = scmp.eq.s32.totalorder %s22, 0
      %p64 = por %p62, %p63
      %p65 = scmp.ne.s32.totalorder %s53, %s54
      %p66 = scmp.eq.s32.totalorder %s23, 1
      %p67 = por %p65, %p66
      %p69 = scmp.ne.s32.totalorder %s54, %s68
      %p70 = scmp.eq.s32.totalorder %s23, 0
      %p71 = por %p69, %p70
      %s73 = sadd.s32 %s72, 1
      %p76 = scmp.eq.s32.totalorder %s17, 1
      %p77 = scmp.ne.s32.totalorder %s72, %s74
      %p78 = scmp.eq.s32.totalorder %s17, 0
      %p79 = por %p77, %p78
      %p80 = scmp.ne.s32.totalorder %s72, %s74
      %p81 = scmp.eq.s32.totalorder %s22, 1
      %p82 = por %p80, %p81
      %p83 = scmp.ne.s32.totalorder %s74, %s75
      %p84 = scmp.eq.s32.totalorder %s22, 0
      %p85 = por %p83, %p84
      %p86 = scmp.ne.s32.totalorder %s74, %s75
      %p87 = scmp.eq.s32.totalorder %s23, 1
      %p88 = por %p86, %p87
      %p90 = scmp.ne.s32.totalorder %s75, %s89
      %p91 = scmp.eq.s32.totalorder %s23, 0
      %p92 = por %p90, %p91
      %s94 = sadd.s32 %s93, 1
      %p97 = scmp.eq.s32.totalorder %s17, 1
      %p98 = scmp.ne.s32.totalorder %s93, %s95
      %p99 = scmp.eq.s32.totalorder %s17, 0
      %p100 = por %p98, %p99
      %p101 = scmp.ne.s32.totalorder %s93, %s95
      %p102 = scmp.eq.s32.totalorder %s22, 1
      %p103 = por %p101, %p102
      %p104 = scmp.ne.s32.totalorder %s95, %s96
      %p105 = scmp.eq.s32.totalorder %s22, 0
      %p106 = por %p104, %p105
      %p107 = scmp.ne.s32.totalorder %s95, %s96
      %p108 = scmp.eq.s32.totalorder %s23, 1
      %p109 = por %p107, %p108
      %p111 = scmp.ne.s32.totalorder %s96, %s110
      %p112 = scmp.eq.s32.totalorder %s23, 0
      %p113 = por %p111, %p112
      %s114 = ssub.s32 %s17, %s24
      %p115 = scmp.eq.s32.totalorder %s114, 0
      %s117 = sadd.s32 %s116, 1
      %s118 = scalar_select %p115, %s116, %s117
      %p121 = pneg %p115
      %p122 = scmp.eq.s32.totalorder %s17, 1
      %p123 = por %p121, %p122
      %p124 = scmp.ne.s32.totalorder %s116, %s119
      %p125 = scmp.eq.s32.totalorder %s17, 0
      %p126 = por %p124, %p125
      %p127 = scmp.ne.s32.totalorder %s116, %s119
      %p128 = scmp.eq.s32.totalorder %s22, 1
      %p129 = por %p127, %p128
      %p130 = scmp.ne.s32.totalorder %s119, %s120
      %p131 = scmp.eq.s32.totalorder %s22, 0
      %p132 = por %p130, %p131
      %p133 = scmp.ne.s32.totalorder %s119, %s120
      %p134 = scmp.eq.s32.totalorder %s23, 1
      %p135 = por %p133, %p134
      %p137 = scmp.ne.s32.totalorder %s120, %s136
      %p138 = scmp.eq.s32.totalorder %s23, 0
      %p139 = por %p137, %p138
      %p140 = scmp.le.s32.totalorder 1, %s17
      %p141 = scmp.lt.s32.totalorder %s17, 3
      %p142 = pnand %p140, %p141
      %p143 = pneg %p142
      // Predicated region
      $region9: #{tpu_custom_call.1} parent=5 // pred_check
        _
      $region10: #{tpu_custom_call.1} parent=5 // pred_check_branch
        %145 = sbr.rel (%p142) target = $region12
      $region11: #{tpu_custom_call.1} parent=5 // pred_region
        %s146 = ssub.s32 %s17, 1
        // Predicated region
        $region13: #{tpu_custom_call.1} parent=11 // pred_check
          %p147 = pneg %p64
        $region14: #{tpu_custom_call.1} parent=11 // pred_check_branch
          %149 = sbr.rel (%p147) target = $region16
        $region15: #{tpu_custom_call.1} parent=11 // pred_region
          %s151 = ssub.s32 256, 256
          %152 = vsyncadd [#allocation6], %s151
          %s154 = sshll.u32 [#allocation5], 4
          %s155 = int_to_ptr.vmem [resolvable:$true] %s154
          %157 = dma.hbm_to_vmem [thread:$0]  %s1, 256, %s155, [#allocation6]
        $region16: #{tpu_custom_call.1} parent=11 // pred_fallthru
          _
        // Predicated region
        $region17: #{tpu_custom_call.1} parent=11 // pred_check
          %p158 = pneg %p85
        $region18: #{tpu_custom_call.1} parent=11 // pred_check_branch
          %160 = sbr.rel (%p158) target = $region20
        $region19: #{tpu_custom_call.1} parent=11 // pred_region
          %s162 = ssub.s32 256, 256
          %163 = vsyncadd [#allocation6], %s162
          %s165 = sshll.u32 [#allocation7], 4
          %s166 = int_to_ptr.vmem [resolvable:$true] %s165
          %168 = dma.hbm_to_vmem [thread:$0]  %s2, 256, %s166, [#allocation6]
        $region20: #{tpu_custom_call.1} parent=11 // pred_fallthru
          _
        // Predicated region
        $region21: #{tpu_custom_call.1} parent=11 // pred_check
          %p169 = pneg %p106
        $region22: #{tpu_custom_call.1} parent=11 // pred_check_branch
          %171 = sbr.rel (%p169) target = $region24
        $region23: #{tpu_custom_call.1} parent=11 // pred_region
          _
        $region24: #{tpu_custom_call.1} parent=11 // pred_fallthru
          _
      $region12: #{tpu_custom_call.1} parent=5 // pred_fallthru
        _
      %p172 = scmp.lt.s32.totalorder %s17, 2
      // Predicated region
      $region25: #{tpu_custom_call.1} parent=5 // pred_check
        %p173 = pneg %p172
      $region26: #{tpu_custom_call.1} parent=5 // pred_check_branch
        %175 = sbr.rel (%p173) target = $region28
      $region27: #{tpu_custom_call.1} parent=5 // pred_region
        // Predicated region
        $region29: #{tpu_custom_call.1} parent=27 // pred_check
          %p176 = pneg %p37
        $region30: #{tpu_custom_call.1} parent=27 // pred_check_branch
          %178 = sbr.rel (%p176) target = $region32
        $region31: #{tpu_custom_call.1} parent=27 // pred_region
          %s179 = sand.u32 %s27, 1
          %s180 = scalar_lea.sflag [#allocation3], %s179
          %s181 = sand.u32 %s27, 1
          %s182 = smul.addr %s181, 512
          %s183 = scalar_lea.vmem [#allocation2], %s182
          %s184 = smul.u32 4, %s17
          %s186 = ssub.s32 8192, 8192
          %187 = vsyncadd %s180, %s186
          %s188 = smul.addr %s184, 16
          %s189 = smul.addr %s188, 128
          %s190 = scalar_lea.hbm %s0, %s189
          %s191 = sshll.u32 %s183, 4
          %s192 = int_to_ptr.vmem [resolvable:$true] %s191
          %197 = dma.hbm_to_vmem [thread:$0]  %s190, 8192, %s192, %s180, 2048, 2048, 128
        $region32: #{tpu_custom_call.1} parent=27 // pred_fallthru
          _
      $region28: #{tpu_custom_call.1} parent=5 // pred_fallthru
        _
      %p198 = scmp.le.s32.totalorder 1, %s17
      %p199 = scmp.lt.s32.totalorder %s17, 3
      %p200 = pnand %p198, %p199
      %p201 = pneg %p200
      // Predicated region
      $region33: #{tpu_custom_call.1} parent=5 // pred_check
        _
      $region34: #{tpu_custom_call.1} parent=5 // pred_check_branch
        %203 = sbr.rel (%p200) target = $region36
      $region35: #{tpu_custom_call.1} parent=5 // pred_region
        %s204 = ssub.s32 %s17, 1
        %s205 = sand.u32 %s30, 1
        %s206 = scalar_lea.sflag [#allocation3], %s205
        %s207 = sand.u32 %s30, 1
        %s208 = smul.addr %s207, 512
        %s209 = scalar_lea.vmem [#allocation2], %s208
        // Predicated region
        $region37: #{tpu_custom_call.1} parent=35 // pred_check
          %p210 = pneg %p43
        $region38: #{tpu_custom_call.1} parent=35 // pred_check_branch
          %212 = sbr.rel (%p210) target = $region40
        $region39: #{tpu_custom_call.1} parent=35 // pred_region
          %213 = dma.done %s206, 8192
        $region40: #{tpu_custom_call.1} parent=35 // pred_fallthru
          _
        // Predicated region
        $region41: #{tpu_custom_call.1} parent=35 // pred_check
          %p214 = pneg %p64
        $region42: #{tpu_custom_call.1} parent=35 // pred_check_branch
          %216 = sbr.rel (%p214) target = $region44
        $region43: #{tpu_custom_call.1} parent=35 // pred_region
          %217 = dma.done [#allocation6], 256
        $region44: #{tpu_custom_call.1} parent=35 // pred_fallthru
          _
        // Predicated region
        $region45: #{tpu_custom_call.1} parent=35 // pred_check
          %p218 = pneg %p85
        $region46: #{tpu_custom_call.1} parent=35 // pred_check_branch
          %220 = sbr.rel (%p218) target = $region48
        $region47: #{tpu_custom_call.1} parent=35 // pred_region
          %221 = dma.done [#allocation6], 256
        $region48: #{tpu_custom_call.1} parent=35 // pred_fallthru
          _
        %s222 = sand.u32 %s30, 1
        %s223 = scalar_lea.sflag [#allocation3], %s222
        %s224 = sand.u32 %s30, 1
        %s225 = smul.addr %s224, 512
        %s226 = scalar_lea.vmem [#allocation2], %s225
        %p227 = pneg %p43
        %p228 = pneg %p40
        %p229 = pneg %p64
        %p230 = pneg %p61
        %p231 = pneg %p85
        %p232 = pneg %p82
        %p233 = pneg %p106
        %p234 = pneg %p103
        %p235 = pneg %p132
        %p236 = pneg %p129
        %s237 = sand.u32 %s119, 1
        %s238 = scalar_lea.sflag [#allocation4], %s237
        %s239 = sand.u32 %s119, 1
        %s240 = smul.addr %s239, 512
        %s241 = scalar_lea.vmem [#allocation8], %s240
        %s242 = smul.u32 4, %s22
        %s243 = smul.u32 4, %s22
        %v244 = vld [vmem:[%s209] sm:$0xff]
        %v245 = vld [vmem:[%s209 + $0x8] sm:$0xff]
        %v246 = vld [vmem:[%s209 + $0x10] sm:$0xff]
        %v247 = vld [vmem:[%s209 + $0x18] sm:$0xff]
        %v248 = vld [vmem:[%s209 + $0x20] sm:$0xff]
        %v249 = vld [vmem:[%s209 + $0x28] sm:$0xff]
        %v250 = vld [vmem:[%s209 + $0x30] sm:$0xff]
        %v251 = vld [vmem:[%s209 + $0x38] sm:$0xff]
        %v252 = vld [vmem:[%s209 + $0x40] sm:$0xff]
        %v253 = vld [vmem:[%s209 + $0x48] sm:$0xff]
        %v254 = vld [vmem:[%s209 + $0x50] sm:$0xff]
        %v255 = vld [vmem:[%s209 + $0x58] sm:$0xff]
        %v256 = vld [vmem:[%s209 + $0x60] sm:$0xff]
        %v257 = vld [vmem:[%s209 + $0x68] sm:$0xff]
        %v258 = vld [vmem:[%s209 + $0x70] sm:$0xff]
        %v259 = vld [vmem:[%s209 + $0x78] sm:$0xff]
        %v260 = vld [vmem:[%s209 + $0x80] sm:$0xff]
        %v261 = vld [vmem:[%s209 + $0x88] sm:$0xff]
        %v262 = vld [vmem:[%s209 + $0x90] sm:$0xff]
        %v263 = vld [vmem:[%s209 + $0x98] sm:$0xff]
        %v264 = vld [vmem:[%s209 + $0xa0] sm:$0xff]
        %v265 = vld [vmem:[%s209 + $0xa8] sm:$0xff]
        %v266 = vld [vmem:[%s209 + $0xb0] sm:$0xff]
        %v267 = vld [vmem:[%s209 + $0xb8] sm:$0xff]
        %v268 = vld [vmem:[%s209 + $0xc0] sm:$0xff]
        %v269 = vld [vmem:[%s209 + $0xc8] sm:$0xff]
        %v270 = vld [vmem:[%s209 + $0xd0] sm:$0xff]
        %v271 = vld [vmem:[%s209 + $0xd8] sm:$0xff]
        %v272 = vld [vmem:[%s209 + $0xe0] sm:$0xff]
        %v273 = vld [vmem:[%s209 + $0xe8] sm:$0xff]
        %v274 = vld [vmem:[%s209 + $0xf0] sm:$0xff]
        %v275 = vld [vmem:[%s209 + $0xf8] sm:$0xff]
        %v276 = vld [vmem:[%s209 + $0x100] sm:$0xff]
        %v277 = vld [vmem:[%s209 + $0x108] sm:$0xff]
        %v278 = vld [vmem:[%s209 + $0x110] sm:$0xff]
        %v279 = vld [vmem:[%s209 + $0x118] sm:$0xff]
        %v280 = vld [vmem:[%s209 + $0x120] sm:$0xff]
        %v281 = vld [vmem:[%s209 + $0x128] sm:$0xff]
        %v282 = vld [vmem:[%s209 + $0x130] sm:$0xff]
        %v283 = vld [vmem:[%s209 + $0x138] sm:$0xff]
        %v284 = vld [vmem:[%s209 + $0x140] sm:$0xff]
        %v285 = vld [vmem:[%s209 + $0x148] sm:$0xff]
        %v286 = vld [vmem:[%s209 + $0x150] sm:$0xff]
        %v287 = vld [vmem:[%s209 + $0x158] sm:$0xff]
        %v288 = vld [vmem:[%s209 + $0x160] sm:$0xff]
        %v289 = vld [vmem:[%s209 + $0x168] sm:$0xff]
        %v290 = vld [vmem:[%s209 + $0x170] sm:$0xff]
        %v291 = vld [vmem:[%s209 + $0x178] sm:$0xff]
        %v292 = vld [vmem:[%s209 + $0x180] sm:$0xff]
        %v293 = vld [vmem:[%s209 + $0x188] sm:$0xff]
        %v294 = vld [vmem:[%s209 + $0x190] sm:$0xff]
        %v295 = vld [vmem:[%s209 + $0x198] sm:$0xff]
        %v296 = vld [vmem:[%s209 + $0x1a0] sm:$0xff]
        %v297 = vld [vmem:[%s209 + $0x1a8] sm:$0xff]
        %v298 = vld [vmem:[%s209 + $0x1b0] sm:$0xff]
        %v299 = vld [vmem:[%s209 + $0x1b8] sm:$0xff]
        %v300 = vld [vmem:[%s209 + $0x1c0] sm:$0xff]
        %v301 = vld [vmem:[%s209 + $0x1c8] sm:$0xff]
        %v302 = vld [vmem:[%s209 + $0x1d0] sm:$0xff]
        %v303 = vld [vmem:[%s209 + $0x1d8] sm:$0xff]
        %v304 = vld [vmem:[%s209 + $0x1e0] sm:$0xff]
        %v305 = vld [vmem:[%s209 + $0x1e8] sm:$0xff]
        %v306 = vld [vmem:[%s209 + $0x1f0] sm:$0xff]
        %v307 = vld [vmem:[%s209 + $0x1f8] sm:$0xff]
        %v308 = vld [vmem:[#allocation5] sm:$0xff]
        %v309 = vld [vmem:[#allocation5 + $0x8] sm:$0xff]
        %v310 = vmul.f32 %v244, %v244
        %v311 = vmul.f32 %v245, %v245
        %v312 = vmul.f32 %v246, %v246
        %v313 = vmul.f32 %v247, %v247
        %v314 = vmul.f32 %v248, %v248
        %v315 = vmul.f32 %v249, %v249
        %v316 = vmul.f32 %v250, %v250
        %v317 = vmul.f32 %v251, %v251
        %v318 = vmul.f32 %v252, %v252
        %v319 = vmul.f32 %v253, %v253
        %v320 = vmul.f32 %v254, %v254
        %v321 = vmul.f32 %v255, %v255
        %v322 = vmul.f32 %v256, %v256
        %v323 = vmul.f32 %v257, %v257
        %v324 = vmul.f32 %v258, %v258
        %v325 = vmul.f32 %v259, %v259
        %v326 = vmul.f32 %v260, %v260
        %v327 = vmul.f32 %v261, %v261
        %v328 = vmul.f32 %v262, %v262
        %v329 = vmul.f32 %v263, %v263
        %v330 = vmul.f32 %v264, %v264
        %v331 = vmul.f32 %v265, %v265
        %v332 = vmul.f32 %v266, %v266
        %v333 = vmul.f32 %v267, %v267
        %v334 = vmul.f32 %v268, %v268
        %v335 = vmul.f32 %v269, %v269
        %v336 = vmul.f32 %v270, %v270
        %v337 = vmul.f32 %v271, %v271
        %v338 = vmul.f32 %v272, %v272
        %v339 = vmul.f32 %v273, %v273
        %v340 = vmul.f32 %v274, %v274
        %v341 = vmul.f32 %v275, %v275
        %v342 = vmul.f32 %v276, %v276
        %v343 = vmul.f32 %v277, %v277
        %v344 = vmul.f32 %v278, %v278
        %v345 = vmul.f32 %v279, %v279
        %v346 = vmul.f32 %v280, %v280
        %v347 = vmul.f32 %v281, %v281
        %v348 = vmul.f32 %v282, %v282
        %v349 = vmul.f32 %v283, %v283
        %v350 = vmul.f32 %v284, %v284
        %v351 = vmul.f32 %v285, %v285
        %v352 = vmul.f32 %v286, %v286
        %v353 = vmul.f32 %v287, %v287
        %v354 = vmul.f32 %v288, %v288
        %v355 = vmul.f32 %v289, %v289
        %v356 = vmul.f32 %v290, %v290
        %v357 = vmul.f32 %v291, %v291
        %v358 = vmul.f32 %v292, %v292
        %v359 = vmul.f32 %v293, %v293
        %v360 = vmul.f32 %v294, %v294
        %v361 = vmul.f32 %v295, %v295
        %v362 = vmul.f32 %v296, %v296
        %v363 = vmul.f32 %v297, %v297
        %v364 = vmul.f32 %v298, %v298
        %v365 = vmul.f32 %v299, %v299
        %v366 = vmul.f32 %v300, %v300
        %v367 = vmul.f32 %v301, %v301
        %v368 = vmul.f32 %v302, %v302
        %v369 = vmul.f32 %v303, %v303
        %v370 = vmul.f32 %v304, %v304
        %v371 = vmul.f32 %v305, %v305
        %v372 = vmul.f32 %v306, %v306
        %v373 = vmul.f32 %v307, %v307
        %v376 = vlaneseq
        %v377 = vshrl.u32 %v376, 7
        %v378 = vsub.s32 0, %v377
        %v379 = vrot.slane %v308, %v378
        %v380 = vlaneseq
        %v381 = vshrl.u32 %v380, 7
        %v382 = vsub.s32 1, %v381
        %v383 = vrot.slane %v308, %v382
        %v384 = vlaneseq
        %v385 = vshrl.u32 %v384, 7
        %v386 = vsub.s32 2, %v385
        %v387 = vrot.slane %v308, %v386
        %v388 = vlaneseq
        %v389 = vshrl.u32 %v388, 7
        %v390 = vsub.s32 3, %v389
        %v391 = vrot.slane %v308, %v390
        %v392 = vlaneseq
        %v393 = vshrl.u32 %v392, 7
        %v394 = vsub.s32 4, %v393
        %v395 = vrot.slane %v308, %v394
        %v396 = vlaneseq
        %v397 = vshrl.u32 %v396, 7
        %v398 = vsub.s32 5, %v397
        %v399 = vrot.slane %v308, %v398
        %v400 = vlaneseq
        %v401 = vshrl.u32 %v400, 7
        %v402 = vsub.s32 6, %v401
        %v403 = vrot.slane %v308, %v402
        %v404 = vlaneseq
        %v405 = vshrl.u32 %v404, 7
        %v406 = vsub.s32 7, %v405
        %v407 = vrot.slane %v308, %v406
        %v408 = vlaneseq
        %v409 = vshrl.u32 %v408, 7
        %v410 = vsub.s32 0, %v409
        %v411 = vrot.slane %v309, %v410
        %v412 = vlaneseq
        %v413 = vshrl.u32 %v412, 7
        %v414 = vsub.s32 1, %v413
        %v415 = vrot.slane %v309, %v414
        %v416 = vlaneseq
        %v417 = vshrl.u32 %v416, 7
        %v418 = vsub.s32 2, %v417
        %v419 = vrot.slane %v309, %v418
        %v420 = vlaneseq
        %v421 = vshrl.u32 %v420, 7
        %v422 = vsub.s32 3, %v421
        %v423 = vrot.slane %v309, %v422
        %v424 = vlaneseq
        %v425 = vshrl.u32 %v424, 7
        %v426 = vsub.s32 4, %v425
        %v427 = vrot.slane %v309, %v426
        %v428 = vlaneseq
        %v429 = vshrl.u32 %v428, 7
        %v430 = vsub.s32 5, %v429
        %v431 = vrot.slane %v309, %v430
        %v432 = vlaneseq
        %v433 = vshrl.u32 %v432, 7
        %v434 = vsub.s32 6, %v433
        %v435 = vrot.slane %v309, %v434
        %v436 = vlaneseq
        %v437 = vshrl.u32 %v436, 7
        %v438 = vsub.s32 7, %v437
        %v439 = vrot.slane %v309, %v438
        %v456 = vmul.f32 %v310, %v379
        %v457 = vmul.f32 %v311, %v383
        %v458 = vmul.f32 %v312, %v387
        %v459 = vmul.f32 %v313, %v391
        %v460 = vmul.f32 %v314, %v395
        %v461 = vmul.f32 %v315, %v399
        %v462 = vmul.f32 %v316, %v403
        %v463 = vmul.f32 %v317, %v407
        %v464 = vmul.f32 %v318, %v411
        %v465 = vmul.f32 %v319, %v415
        %v466 = vmul.f32 %v320, %v419
        %v467 = vmul.f32 %v321, %v423
        %v468 = vmul.f32 %v322, %v427
        %v469 = vmul.f32 %v323, %v431
        %v470 = vmul.f32 %v324, %v435
        %v471 = vmul.f32 %v325, %v439
        %v472 = vmul.f32 %v326, %v379
        %v473 = vmul.f32 %v327, %v383
        %v474 = vmul.f32 %v328, %v387
        %v475 = vmul.f32 %v329, %v391
        %v476 = vmul.f32 %v330, %v395
        %v477 = vmul.f32 %v331, %v399
        %v478 = vmul.f32 %v332, %v403
        %v479 = vmul.f32 %v333, %v407
        %v480 = vmul.f32 %v334, %v411
        %v481 = vmul.f32 %v335, %v415
        %v482 = vmul.f32 %v336, %v419
        %v483 = vmul.f32 %v337, %v423
        %v484 = vmul.f32 %v338, %v427
        %v485 = vmul.f32 %v339, %v431
        %v486 = vmul.f32 %v340, %v435
        %v487 = vmul.f32 %v341, %v439
        %v488 = vmul.f32 %v342, %v379
        %v489 = vmul.f32 %v343, %v383
        %v490 = vmul.f32 %v344, %v387
        %v491 = vmul.f32 %v345, %v391
        %v492 = vmul.f32 %v346, %v395
        %v493 = vmul.f32 %v347, %v399
        %v494 = vmul.f32 %v348, %v403
        %v495 = vmul.f32 %v349, %v407
        %v496 = vmul.f32 %v350, %v411
        %v497 = vmul.f32 %v351, %v415
        %v498 = vmul.f32 %v352, %v419
        %v499 = vmul.f32 %v353, %v423
        %v500 = vmul.f32 %v354, %v427
        %v501 = vmul.f32 %v355, %v431
        %v502 = vmul.f32 %v356, %v435
        %v503 = vmul.f32 %v357, %v439
        %v504 = vmul.f32 %v358, %v379
        %v505 = vmul.f32 %v359, %v383
        %v506 = vmul.f32 %v360, %v387
        %v507 = vmul.f32 %v361, %v391
        %v508 = vmul.f32 %v362, %v395
        %v509 = vmul.f32 %v363, %v399
        %v510 = vmul.f32 %v364, %v403
        %v511 = vmul.f32 %v365, %v407
        %v512 = vmul.f32 %v366, %v411
        %v513 = vmul.f32 %v367, %v415
        %v514 = vmul.f32 %v368, %v419
        %v515 = vmul.f32 %v369, %v423
        %v516 = vmul.f32 %v370, %v427
        %v517 = vmul.f32 %v371, %v431
        %v518 = vmul.f32 %v372, %v435
        %v519 = vmul.f32 %v373, %v439
        %v520 = vadd.f32 %v456, %v457
        %v521 = vadd.f32 %v520, %v458
        %v522 = vadd.f32 %v521, %v459
        %v523 = vadd.f32 %v522, %v460
        %v524 = vadd.f32 %v523, %v461
        %v525 = vadd.f32 %v524, %v462
        %v526 = vadd.f32 %v525, %v463
        %v527 = vadd.f32 %v526, %v464
        %v528 = vadd.f32 %v527, %v465
        %v529 = vadd.f32 %v528, %v466
        %v530 = vadd.f32 %v529, %v467
        %v531 = vadd.f32 %v530, %v468
        %v532 = vadd.f32 %v531, %v469
        %v533 = vadd.f32 %v532, %v470
        %v534 = vadd.f32 %v533, %v471
        %535 = vadd.xlane.f32.xlu0 %v534
        %v536 = vpop.xlane.xlu0 %535
        %v537 = vadd.f32 %v472, %v473
        %v538 = vadd.f32 %v537, %v474
        %v539 = vadd.f32 %v538, %v475
        %v540 = vadd.f32 %v539, %v476
        %v541 = vadd.f32 %v540, %v477
        %v542 = vadd.f32 %v541, %v478
        %v543 = vadd.f32 %v542, %v479
        %v544 = vadd.f32 %v543, %v480
        %v545 = vadd.f32 %v544, %v481
        %v546 = vadd.f32 %v545, %v482
        %v547 = vadd.f32 %v546, %v483
        %v548 = vadd.f32 %v547, %v484
        %v549 = vadd.f32 %v548, %v485
        %v550 = vadd.f32 %v549, %v486
        %v551 = vadd.f32 %v550, %v487
        %552 = vadd.xlane.f32.xlu0 %v551
        %v553 = vpop.xlane.xlu0 %552
        %v554 = vadd.f32 %v488, %v489
        %v555 = vadd.f32 %v554, %v490
        %v556 = vadd.f32 %v555, %v491
        %v557 = vadd.f32 %v556, %v492
        %v558 = vadd.f32 %v557, %v493
        %v559 = vadd.f32 %v558, %v494
        %v560 = vadd.f32 %v559, %v495
        %v561 = vadd.f32 %v560, %v496
        %v562 = vadd.f32 %v561, %v497
        %v563 = vadd.f32 %v562, %v498
        %v564 = vadd.f32 %v563, %v499
        %v565 = vadd.f32 %v564, %v500
        %v566 = vadd.f32 %v565, %v501
        %v567 = vadd.f32 %v566, %v502
        %v568 = vadd.f32 %v567, %v503
        %569 = vadd.xlane.f32.xlu0 %v568
        %v570 = vpop.xlane.xlu0 %569
        %v571 = vadd.f32 %v504, %v505
        %v572 = vadd.f32 %v571, %v506
        %v573 = vadd.f32 %v572, %v507
        %v574 = vadd.f32 %v573, %v508
        %v575 = vadd.f32 %v574, %v509
        %v576 = vadd.f32 %v575, %v510
        %v577 = vadd.f32 %v576, %v511
        %v578 = vadd.f32 %v577, %v512
        %v579 = vadd.f32 %v578, %v513
        %v580 = vadd.f32 %v579, %v514
        %v581 = vadd.f32 %v580, %v515
        %v582 = vadd.f32 %v581, %v516
        %v583 = vadd.f32 %v582, %v517
        %v584 = vadd.f32 %v583, %v518
        %v585 = vadd.f32 %v584, %v519
        %586 = vadd.xlane.f32.xlu0 %v585
        %v587 = vpop.xlane.xlu0 %586
        %588 = vadd.xlane.f32.xlu0 %v244
        %v589 = vpop.xlane.xlu0 %588
        %590 = vadd.xlane.f32.xlu0 %v260
        %v591 = vpop.xlane.xlu0 %590
        %592 = vadd.xlane.f32.xlu0 %v276
        %v593 = vpop.xlane.xlu0 %592
        %594 = vadd.xlane.f32.xlu0 %v292
        %v595 = vpop.xlane.xlu0 %594
        %v596 = vrcp.pop 128.0
        %v597 = vmul.f32 %v589, %v596
        %v598 = vmul.f32 %v591, %v596
        %v599 = vmul.f32 %v593, %v596
        %v600 = vmul.f32 %v595, %v596
        %v601 = vsub.f32 %v244, %v597
        %v602 = vsub.f32 %v260, %v598
        %v603 = vsub.f32 %v276, %v599
        %v604 = vsub.f32 %v292, %v600
        %v605 = vmul.f32 %v601, %v601
        %v606 = vmul.f32 %v602, %v602
        %v607 = vmul.f32 %v603, %v603
        %v608 = vmul.f32 %v604, %v604
        %609 = vadd.xlane.f32.xlu0 %v605
        %v610 = vpop.xlane.xlu0 %609
        %611 = vadd.xlane.f32.xlu0 %v606
        %v612 = vpop.xlane.xlu0 %611
        %613 = vadd.xlane.f32.xlu0 %v607
        %v614 = vpop.xlane.xlu0 %613
        %615 = vadd.xlane.f32.xlu0 %v608
        %v616 = vpop.xlane.xlu0 %615
        %v617 = vmul.f32 %v610, 0.001953125
        %v618 = vmul.f32 %v612, 0.001953125
        %v619 = vmul.f32 %v614, 0.001953125
        %v620 = vmul.f32 %v616, 0.001953125
        %v621 = vadd.f32 %v536, %v617
        %v622 = vadd.f32 %v553, %v618
        %v623 = vadd.f32 %v570, %v619
        %v624 = vadd.f32 %v587, %v620
        %v625 = vadd.f32 %v621, 1e-05
        %v626 = vadd.f32 %v622, 1e-05
        %v627 = vadd.f32 %v623, 1e-05
        %v628 = vadd.f32 %v624, 1e-05
        %v629 = vrsqrt.pop %v625
        %v630 = vrsqrt.pop %v626
        %v631 = vrsqrt.pop %v627
        %v632 = vrsqrt.pop %v628
        %v633 = vmul.f32 %v244, %v629
        %v634 = vmul.f32 %v245, %v629
        %v635 = vmul.f32 %v246, %v629
        %v636 = vmul.f32 %v247, %v629
        %v637 = vmul.f32 %v248, %v629
        %v638 = vmul.f32 %v249, %v629
        %v639 = vmul.f32 %v250, %v629
        %v640 = vmul.f32 %v251, %v629
        %v641 = vmul.f32 %v252, %v629
        %v642 = vmul.f32 %v253, %v629
        %v643 = vmul.f32 %v254, %v629
        %v644 = vmul.f32 %v255, %v629
        %v645 = vmul.f32 %v256, %v629
        %v646 = vmul.f32 %v257, %v629
        %v647 = vmul.f32 %v258, %v629
        %v648 = vmul.f32 %v259, %v629
        %v649 = vmul.f32 %v260, %v630
        %v650 = vmul.f32 %v261, %v630
        %v651 = vmul.f32 %v262, %v630
        %v652 = vmul.f32 %v263, %v630
        %v653 = vmul.f32 %v264, %v630
        %v654 = vmul.f32 %v265, %v630
        %v655 = vmul.f32 %v266, %v630
        %v656 = vmul.f32 %v267, %v630
        %v657 = vmul.f32 %v268, %v630
        %v658 = vmul.f32 %v269, %v630
        %v659 = vmul.f32 %v270, %v630
        %v660 = vmul.f32 %v271, %v630
        %v661 = vmul.f32 %v272, %v630
        %v662 = vmul.f32 %v273, %v630
        %v663 = vmul.f32 %v274, %v630
        %v664 = vmul.f32 %v275, %v630
        %v665 = vmul.f32 %v276, %v631
        %v666 = vmul.f32 %v277, %v631
        %v667 = vmul.f32 %v278, %v631
        %v668 = vmul.f32 %v279, %v631
        %v669 = vmul.f32 %v280, %v631
        %v670 = vmul.f32 %v281, %v631
        %v671 = vmul.f32 %v282, %v631
        %v672 = vmul.f32 %v283, %v631
        %v673 = vmul.f32 %v284, %v631
        %v674 = vmul.f32 %v285, %v631
        %v675 = vmul.f32 %v286, %v631
        %v676 = vmul.f32 %v287, %v631
        %v677 = vmul.f32 %v288, %v631
        %v678 = vmul.f32 %v289, %v631
        %v679 = vmul.f32 %v290, %v631
        %v680 = vmul.f32 %v291, %v631
        %v681 = vmul.f32 %v292, %v632
        %v682 = vmul.f32 %v293, %v632
        %v683 = vmul.f32 %v294, %v632
        %v684 = vmul.f32 %v295, %v632
        %v685 = vmul.f32 %v296, %v632
        %v686 = vmul.f32 %v297, %v632
        %v687 = vmul.f32 %v298, %v632
        %v688 = vmul.f32 %v299, %v632
        %v689 = vmul.f32 %v300, %v632
        %v690 = vmul.f32 %v301, %v632
        %v691 = vmul.f32 %v302, %v632
        %v692 = vmul.f32 %v303, %v632
        %v693 = vmul.f32 %v304, %v632
        %v694 = vmul.f32 %v305, %v632
        %v695 = vmul.f32 %v306, %v632
        %v696 = vmul.f32 %v307, %v632
        %v697 = vld [vmem:[#allocation7] sm:$0xff]
        %v698 = vld [vmem:[#allocation7 + $0x8] sm:$0xff]
        %v701 = vlaneseq
        %v702 = vshrl.u32 %v701, 7
        %v703 = vsub.s32 0, %v702
        %v704 = vrot.slane %v697, %v703
        %v705 = vlaneseq
        %v706 = vshrl.u32 %v705, 7
        %v707 = vsub.s32 1, %v706
        %v708 = vrot.slane %v697, %v707
        %v709 = vlaneseq
        %v710 = vshrl.u32 %v709, 7
        %v711 = vsub.s32 2, %v710
        %v712 = vrot.slane %v697, %v711
        %v713 = vlaneseq
        %v714 = vshrl.u32 %v713, 7
        %v715 = vsub.s32 3, %v714
        %v716 = vrot.slane %v697, %v715
        %v717 = vlaneseq
        %v718 = vshrl.u32 %v717, 7
        %v719 = vsub.s32 4, %v718
        %v720 = vrot.slane %v697, %v719
        %v721 = vlaneseq
        %v722 = vshrl.u32 %v721, 7
        %v723 = vsub.s32 5, %v722
        %v724 = vrot.slane %v697, %v723
        %v725 = vlaneseq
        %v726 = vshrl.u32 %v725, 7
        %v727 = vsub.s32 6, %v726
        %v728 = vrot.slane %v697, %v727
        %v729 = vlaneseq
        %v730 = vshrl.u32 %v729, 7
        %v731 = vsub.s32 7, %v730
        %v732 = vrot.slane %v697, %v731
        %v733 = vlaneseq
        %v734 = vshrl.u32 %v733, 7
        %v735 = vsub.s32 0, %v734
        %v736 = vrot.slane %v698, %v735
        %v737 = vlaneseq
        %v738 = vshrl.u32 %v737, 7
        %v739 = vsub.s32 1, %v738
        %v740 = vrot.slane %v698, %v739
        %v741 = vlaneseq
        %v742 = vshrl.u32 %v741, 7
        %v743 = vsub.s32 2, %v742
        %v744 = vrot.slane %v698, %v743
        %v745 = vlaneseq
        %v746 = vshrl.u32 %v745, 7
        %v747 = vsub.s32 3, %v746
        %v748 = vrot.slane %v698, %v747
        %v749 = vlaneseq
        %v750 = vshrl.u32 %v749, 7
        %v751 = vsub.s32 4, %v750
        %v752 = vrot.slane %v698, %v751
        %v753 = vlaneseq
        %v754 = vshrl.u32 %v753, 7
        %v755 = vsub.s32 5, %v754
        %v756 = vrot.slane %v698, %v755
        %v757 = vlaneseq
        %v758 = vshrl.u32 %v757, 7
        %v759 = vsub.s32 6, %v758
        %v760 = vrot.slane %v698, %v759
        %v761 = vlaneseq
        %v762 = vshrl.u32 %v761, 7
        %v763 = vsub.s32 7, %v762
        %v764 = vrot.slane %v698, %v763
        %v781 = vmul.f32 %v633, %v704
        %v782 = vmul.f32 %v634, %v708
        %v783 = vmul.f32 %v635, %v712
        %v784 = vmul.f32 %v636, %v716
        %v785 = vmul.f32 %v637, %v720
        %v786 = vmul.f32 %v638, %v724
        %v787 = vmul.f32 %v639, %v728
        %v788 = vmul.f32 %v640, %v732
        %v789 = vmul.f32 %v641, %v736
        %v790 = vmul.f32 %v642, %v740
        %v791 = vmul.f32 %v643, %v744
        %v792 = vmul.f32 %v644, %v748
        %v793 = vmul.f32 %v645, %v752
        %v794 = vmul.f32 %v646, %v756
        %v795 = vmul.f32 %v647, %v760
        %v796 = vmul.f32 %v648, %v764
        %v797 = vmul.f32 %v649, %v704
        %v798 = vmul.f32 %v650, %v708
        %v799 = vmul.f32 %v651, %v712
        %v800 = vmul.f32 %v652, %v716
        %v801 = vmul.f32 %v653, %v720
        %v802 = vmul.f32 %v654, %v724
        %v803 = vmul.f32 %v655, %v728
        %v804 = vmul.f32 %v656, %v732
        %v805 = vmul.f32 %v657, %v736
        %v806 = vmul.f32 %v658, %v740
        %v807 = vmul.f32 %v659, %v744
        %v808 = vmul.f32 %v660, %v748
        %v809 = vmul.f32 %v661, %v752
        %v810 = vmul.f32 %v662, %v756
        %v811 = vmul.f32 %v663, %v760
        %v812 = vmul.f32 %v664, %v764
        %v813 = vmul.f32 %v665, %v704
        %v814 = vmul.f32 %v666, %v708
        %v815 = vmul.f32 %v667, %v712
        %v816 = vmul.f32 %v668, %v716
        %v817 = vmul.f32 %v669, %v720
        %v818 = vmul.f32 %v670, %v724
        %v819 = vmul.f32 %v671, %v728
        %v820 = vmul.f32 %v672, %v732
        %v821 = vmul.f32 %v673, %v736
        %v822 = vmul.f32 %v674, %v740
        %v823 = vmul.f32 %v675, %v744
        %v824 = vmul.f32 %v676, %v748
        %v825 = vmul.f32 %v677, %v752
        %v826 = vmul.f32 %v678, %v756
        %v827 = vmul.f32 %v679, %v760
        %v828 = vmul.f32 %v680, %v764
        %v829 = vmul.f32 %v681, %v704
        %v830 = vmul.f32 %v682, %v708
        %v831 = vmul.f32 %v683, %v712
        %v832 = vmul.f32 %v684, %v716
        %v833 = vmul.f32 %v685, %v720
        %v834 = vmul.f32 %v686, %v724
        %v835 = vmul.f32 %v687, %v728
        %v836 = vmul.f32 %v688, %v732
        %v837 = vmul.f32 %v689, %v736
        %v838 = vmul.f32 %v690, %v740
        %v839 = vmul.f32 %v691, %v744
        %v840 = vmul.f32 %v692, %v748
        %v841 = vmul.f32 %v693, %v752
        %v842 = vmul.f32 %v694, %v756
        %v843 = vmul.f32 %v695, %v760
        %v844 = vmul.f32 %v696, %v764
        %845 = vst [vmem:[%s241] sm:$0xff] %v781
        %846 = vst [vmem:[%s241 + $0x8] sm:$0xff] %v782
        %847 = vst [vmem:[%s241 + $0x10] sm:$0xff] %v783
        %848 = vst [vmem:[%s241 + $0x18] sm:$0xff] %v784
        %849 = vst [vmem:[%s241 + $0x20] sm:$0xff] %v785
        %850 = vst [vmem:[%s241 + $0x28] sm:$0xff] %v786
        %851 = vst [vmem:[%s241 + $0x30] sm:$0xff] %v787
        %852 = vst [vmem:[%s241 + $0x38] sm:$0xff] %v788
        %853 = vst [vmem:[%s241 + $0x40] sm:$0xff] %v789
        %854 = vst [vmem:[%s241 + $0x48] sm:$0xff] %v790
        %855 = vst [vmem:[%s241 + $0x50] sm:$0xff] %v791
        %856 = vst [vmem:[%s241 + $0x58] sm:$0xff] %v792
        %857 = vst [vmem:[%s241 + $0x60] sm:$0xff] %v793
        %858 = vst [vmem:[%s241 + $0x68] sm:$0xff] %v794
        %859 = vst [vmem:[%s241 + $0x70] sm:$0xff] %v795
        %860 = vst [vmem:[%s241 + $0x78] sm:$0xff] %v796
        %861 = vst [vmem:[%s241 + $0x80] sm:$0xff] %v797
        %862 = vst [vmem:[%s241 + $0x88] sm:$0xff] %v798
        %863 = vst [vmem:[%s241 + $0x90] sm:$0xff] %v799
        %864 = vst [vmem:[%s241 + $0x98] sm:$0xff] %v800
        %865 = vst [vmem:[%s241 + $0xa0] sm:$0xff] %v801
        %866 = vst [vmem:[%s241 + $0xa8] sm:$0xff] %v802
        %867 = vst [vmem:[%s241 + $0xb0] sm:$0xff] %v803
        %868 = vst [vmem:[%s241 + $0xb8] sm:$0xff] %v804
        %869 = vst [vmem:[%s241 + $0xc0] sm:$0xff] %v805
        %870 = vst [vmem:[%s241 + $0xc8] sm:$0xff] %v806
        %871 = vst [vmem:[%s241 + $0xd0] sm:$0xff] %v807
        %872 = vst [vmem:[%s241 + $0xd8] sm:$0xff] %v808
        %873 = vst [vmem:[%s241 + $0xe0] sm:$0xff] %v809
        %874 = vst [vmem:[%s241 + $0xe8] sm:$0xff] %v810
        %875 = vst [vmem:[%s241 + $0xf0] sm:$0xff] %v811
        %876 = vst [vmem:[%s241 + $0xf8] sm:$0xff] %v812
        %877 = vst [vmem:[%s241 + $0x100] sm:$0xff] %v813
        %878 = vst [vmem:[%s241 + $0x108] sm:$0xff] %v814
        %879 = vst [vmem:[%s241 + $0x110] sm:$0xff] %v815
        %880 = vst [vmem:[%s241 + $0x118] sm:$0xff] %v816
        %881 = vst [vmem:[%s241 + $0x120] sm:$0xff] %v817
        %882 = vst [vmem:[%s241 + $0x128] sm:$0xff] %v818
        %883 = vst [vmem:[%s241 + $0x130] sm:$0xff] %v819
        %884 = vst [vmem:[%s241 + $0x138] sm:$0xff] %v820
        %885 = vst [vmem:[%s241 + $0x140] sm:$0xff] %v821
        %886 = vst [vmem:[%s241 + $0x148] sm:$0xff] %v822
        %887 = vst [vmem:[%s241 + $0x150] sm:$0xff] %v823
        %888 = vst [vmem:[%s241 + $0x158] sm:$0xff] %v824
        %889 = vst [vmem:[%s241 + $0x160] sm:$0xff] %v825
        %890 = vst [vmem:[%s241 + $0x168] sm:$0xff] %v826
        %891 = vst [vmem:[%s241 + $0x170] sm:$0xff] %v827
        %892 = vst [vmem:[%s241 + $0x178] sm:$0xff] %v828
        %893 = vst [vmem:[%s241 + $0x180] sm:$0xff] %v829
        %894 = vst [vmem:[%s241 + $0x188] sm:$0xff] %v830
        %895 = vst [vmem:[%s241 + $0x190] sm:$0xff] %v831
        %896 = vst [vmem:[%s241 + $0x198] sm:$0xff] %v832
        %897 = vst [vmem:[%s241 + $0x1a0] sm:$0xff] %v833
        %898 = vst [vmem:[%s241 + $0x1a8] sm:$0xff] %v834
        %899 = vst [vmem:[%s241 + $0x1b0] sm:$0xff] %v835
        %900 = vst [vmem:[%s241 + $0x1b8] sm:$0xff] %v836
        %901 = vst [vmem:[%s241 + $0x1c0] sm:$0xff] %v837
        %902 = vst [vmem:[%s241 + $0x1c8] sm:$0xff] %v838
        %903 = vst [vmem:[%s241 + $0x1d0] sm:$0xff] %v839
        %904 = vst [vmem:[%s241 + $0x1d8] sm:$0xff] %v840
        %905 = vst [vmem:[%s241 + $0x1e0] sm:$0xff] %v841
        %906 = vst [vmem:[%s241 + $0x1e8] sm:$0xff] %v842
        %907 = vst [vmem:[%s241 + $0x1f0] sm:$0xff] %v843
        %908 = vst [vmem:[%s241 + $0x1f8] sm:$0xff] %v844
        %v909 = vmul.f32 %v601, %v629
        %v910 = vmul.f32 %v602, %v630
        %v911 = vmul.f32 %v603, %v631
        %v912 = vmul.f32 %v604, %v632
        %v913 = vmul.f32 %v909, %v704
        %v914 = vmul.f32 %v910, %v704
        %v915 = vmul.f32 %v911, %v704
        %v916 = vmul.f32 %v912, %v704
        %v917 = vld [vmem:[%s3] sm:$0x1]
        %v919 = vlaneseq
        %v920 = vshrl.u32 %v919, 7
        %v921 = vsub.s32 0, %v920
        %v922 = vrot.slane %v917, %v921
        %v924 = vadd.f32 %v913, %v922
        %v925 = vadd.f32 %v914, %v922
        %v926 = vadd.f32 %v915, %v922
        %v927 = vadd.f32 %v916, %v922
        %928 = vst [vmem:[%s241] sm:$0xff] %v924
        %929 = vst [vmem:[%s241 + $0x80] sm:$0xff] %v925
        %930 = vst [vmem:[%s241 + $0x100] sm:$0xff] %v926
        %931 = vst [vmem:[%s241 + $0x180] sm:$0xff] %v927
        %s932 = sand.u32 %s119, 1
        %s933 = scalar_lea.sflag [#allocation4], %s932
        %s934 = sand.u32 %s119, 1
        %s935 = smul.addr %s934, 512
        %s936 = scalar_lea.vmem [#allocation8], %s935
        // Predicated region
        $region49: #{tpu_custom_call.1} parent=35 // pred_check
          %p937 = pneg %p129
        $region50: #{tpu_custom_call.1} parent=35 // pred_check_branch
          %939 = sbr.rel (%p937) target = $region52
        $region51: #{tpu_custom_call.1} parent=35 // pred_region
          %s940 = smul.u32 4, %s22
          %s942 = ssub.s32 8192, 8192
          %943 = vsyncadd %s933, %s942
          %s944 = smul.addr %s940, 16
          %s945 = smul.addr %s944, 128
          %s946 = scalar_lea.hbm %s4, %s945
          %s947 = sshll.u32 %s936, 4
          %s948 = int_to_ptr.vmem [resolvable:$true] %s947
          %953 = dma.vmem_to_hbm [thread:$0]  %s948, 8192, %s946, %s933, 2048, 2048, 128
        $region52: #{tpu_custom_call.1} parent=35 // pred_fallthru
          _
      $region36: #{tpu_custom_call.1} parent=5 // pred_fallthru
        _
      %p954 = scmp.le.s32.totalorder 2, %s17
      // Predicated region
      $region53: #{tpu_custom_call.1} parent=5 // pred_check
        %p955 = pneg %p954
      $region54: #{tpu_custom_call.1} parent=5 // pred_check_branch
        %957 = sbr.rel (%p955) target = $region56
      $region55: #{tpu_custom_call.1} parent=5 // pred_region
        %s958 = ssub.s32 %s17, 2
        // Predicated region
        $region57: #{tpu_custom_call.1} parent=55 // pred_check
          %p959 = pneg %p135
        $region58: #{tpu_custom_call.1} parent=55 // pred_check_branch
          %961 = sbr.rel (%p959) target = $region60
        $region59: #{tpu_custom_call.1} parent=55 // pred_region
          %s962 = sand.u32 %s120, 1
          %s963 = scalar_lea.sflag [#allocation4], %s962
          %s964 = sand.u32 %s120, 1
          %s965 = smul.addr %s964, 512
          %s966 = scalar_lea.vmem [#allocation8], %s965
          %967 = dma.done %s963, 8192
        $region60: #{tpu_custom_call.1} parent=55 // pred_fallthru
          _
      $region56: #{tpu_custom_call.1} parent=5 // pred_fallthru
        _
    $region6: #{tpu_custom_call.1} parent=1 // loop_footer
      %s21 = sadd.s32 1, %s17
    $region7: #{tpu_custom_call.1} parent=1 // loop_footer_branch
      %16 = sbr.rel target = $region3
    $region8: #{tpu_custom_call.1} parent=1 // loop_exit
      _
    %968 = vsyncpa [#allocation3], 1
    %s969 = scalar_lea.sflag [#allocation3], 1
    %970 = vsyncpa %s969, 1
    %971 = vsyncpa [#allocation6], 1
    %972 = vsyncpa [#allocation4], 1
    %s973 = scalar_lea.sflag [#allocation4], 1
    %974 = vsyncpa %s973, 1

</llo_original>
